<compile_context>
chip_gen: v7x
topology: tpu7x:2x2x1
jax: 0.10.0
libtpu: 0.0.40
codegen_flags: <defaults>
</compile_context>

<pallas_src>
import functools
import math

import jax
import jax.numpy as jnp
from jax.experimental import pallas as pl
from jax.experimental.pallas import tpu as pltpu


def _add_pe_kernel(x_ref, pe_ref, o_ref, *, batch: int, d_model: int,
                   lane_aligned: bool):
    # x_ref / o_ref : (TILE_T, B*D) dense VMEM block
    # pe_ref        : (TILE_T, D)   VMEM block
    pe = pe_ref[...]
    if lane_aligned or batch == 1:
        # Vreg-aligned lane slices: zero-cost views, pe vregs reused for every
        # batch element, unmasked vld/vst.
        for b in range(batch):
            sl = slice(b * d_model, (b + 1) * d_model)
            o_ref[:, sl] = x_ref[:, sl] + pe
    else:
        # D not a multiple of 128: one lane-concat of pe per tile (single XLU
        # relayout), then a single dense add + full-width lane-dense store,
        # instead of B misaligned partial loads/stores.
        pe_full = jnp.concatenate([pe] * batch, axis=1)
        o_ref[...] = x_ref[...] + pe_full


def positional_encoding_forward(input_batch: jax.Array, pe: jax.Array) -> jax.Array:
    """input_batch: (T, B, D); pe: (maxLen, 1, D). Returns input_batch + pe[:T]."""
    T, B, D = input_batch.shape
    dtype = input_batch.dtype

    # Keep everything in the activation dtype (bf16 path stays bf16).
    pe_2d = pe[:T, 0, :].astype(dtype)          # (T, D)
    x_2d = input_batch.reshape(T, B * D)        # lane-dense 2D view (free reshape)

    # Pick TILE_T so the x/out block is ~2 MiB (>= ~85% of HBM roofline for
    # dense streaming adds).  With x, pe and out double-buffered this stays
    # well under the scoped VMEM defaults on every generation.
    itemsize = jnp.dtype(dtype).itemsize
    row_bytes = B * D * itemsize
    target_block_bytes = 2 * 1024 * 1024
    tile_t = max(1, target_block_bytes // row_bytes)
    if tile_t < T:
        tile_t = max(8, (tile_t // 8) * 8)      # sublane-dense second-to-last dim
    tile_t = min(tile_t, T)
    grid_t = pl.cdiv(T, tile_t)

    kernel = functools.partial(
        _add_pe_kernel, batch=B, d_model=D, lane_aligned=(D % 128 == 0))

    out_2d = pl.pallas_call(
        kernel,
        out_shape=jax.ShapeDtypeStruct((T, B * D), dtype),
        grid_spec=pltpu.PrefetchScalarGridSpec(
            num_scalar_prefetch=0,
            grid=(grid_t,),
            in_specs=[
                pl.BlockSpec((tile_t, B * D), lambda t: (t, 0)),
                pl.BlockSpec((tile_t, D), lambda t: (t, 0)),
            ],
            out_specs=pl.BlockSpec((tile_t, B * D), lambda t: (t, 0)),
        ),
        compiler_params=pltpu.CompilerParams(
            # Parallel leading axis -> both TensorCores used on v7x megacore.
            dimension_semantics=("parallel",),
            # 48 MiB is safe on every generation (v7x physical VMEM is 64 MiB)
            # and leaves headroom over the 16/32 MiB scoped defaults.
            vmem_limit_bytes=48 * 1024 * 1024,
        ),
    )(x_2d, pe_2d)

    return out_2d.reshape(T, B, D)


def make_positional_encoding(d_model: int, max_len: int) -> jax.Array:
    """Build the PE buffer exactly as the PyTorch __init__ does: (maxLen, 1, d_model).

    Built once outside the hot path. (Like the PyTorch reference, assumes even
    d_model; odd d_model would shape-mismatch on the cos assignment.)
    """
    position = jnp.arange(0, max_len, dtype=jnp.float32)[:, None]           # (maxLen, 1)
    denominator = jnp.exp(
        jnp.arange(0, d_model, 2, dtype=jnp.float32) * (math.log(10000.0) / d_model)
    )                                                                        # (d_model/2,)
    args = position / denominator                                            # (maxLen, d_model/2)
    pe = jnp.zeros((max_len, d_model), dtype=jnp.float32)
    pe = pe.at[:, 0::2].set(jnp.sin(args))
    pe = pe.at[:, 1::2].set(jnp.cos(args))
    # .unsqueeze(0).transpose(0, 1) -> (maxLen, 1, d_model)
    return pe[:, None, :]


if __name__ == "__main__":
    # Small shapes consistent with the forward: inputBatch is (T, B, dModel).
    T, B, D = 8, 2, 32
    MAX_LEN = 16

    pe = make_positional_encoding(d_model=D, max_len=MAX_LEN)

    key = jax.random.PRNGKey(0)
    x = jax.random.normal(key, (T, B, D), dtype=jnp.float32)

    out = positional_encoding_forward(x, pe)
    out = jax.block_until_ready(out)

    # Reference check in plain JAX (same broadcast semantics as PyTorch).
    ref = x + pe[:T]
    assert out.shape == (T, B, D)
    assert jnp.allclose(out, ref, atol=1e-6), "mismatch vs reference"

    print("KERNEL_OK")
</pallas_src>

<mosaic_0001>
module attributes {stable_mosaic.version = 11 : i64} {
  func.func @_add_pe_kernel(%arg0: i32, %arg1: memref<8x64xf32, #tpu.memory_space<vmem>>, %arg2: memref<8x32xf32, #tpu.memory_space<vmem>>, %arg3: memref<8x64xf32, #tpu.memory_space<vmem>>) attributes {dimension_semantics = [#tpu.dimension_semantics<parallel>], iteration_bounds = array<i64: 1>, scalar_prefetch = 0 : i64, scratch_operands = 0 : i64, tpu.core_type = #tpu.core_type<tc>, window_params = [{transform_indices = @transform_0, window_bounds = array<i64: 8, 64>}, {transform_indices = @transform_1, window_bounds = array<i64: 8, 32>}, {transform_indices = @transform_2, window_bounds = array<i64: 8, 64>}]} {
    %c0 = arith.constant 0 : index
    %c0_0 = arith.constant 0 : index
    %0 = vector.load %arg2[%c0, %c0_0] : memref<8x32xf32, #tpu.memory_space<vmem>>, vector<8x32xf32>
    %1 = tpu.concatenate %0, %0 in 1 : vector<8x32xf32>, vector<8x32xf32> -> vector<8x64xf32>
    %c0_1 = arith.constant 0 : index
    %c0_2 = arith.constant 0 : index
    %2 = vector.load %arg1[%c0_1, %c0_2] : memref<8x64xf32, #tpu.memory_space<vmem>>, vector<8x64xf32>
    %3 = arith.addf %2, %1 : vector<8x64xf32>
    %c0_3 = arith.constant 0 : index
    %c0_4 = arith.constant 0 : index
    %4 = vector.load %arg3[%c0_3, %c0_4] : memref<8x64xf32, #tpu.memory_space<vmem>>, vector<8x64xf32>
    tpu.vector_store %arg3[%c0_3, %c0_4], %3 {strides = array<i32>} : memref<8x64xf32, #tpu.memory_space<vmem>>, vector<8x64xf32>,
    return
  }
  func.func @transform_0(%arg0: i32) -> (i32, i32) {
    %c0_i32 = arith.constant 0 : i32
    %c0_i32_0 = arith.constant 0 : i32
    return %arg0, %c0_i32 : i32, i32
  }
  func.func @transform_1(%arg0: i32) -> (i32, i32) {
    %c0_i32 = arith.constant 0 : i32
    %c0_i32_0 = arith.constant 0 : i32
    return %arg0, %c0_i32 : i32, i32
  }
  func.func @transform_2(%arg0: i32) -> (i32, i32) {
    %c0_i32 = arith.constant 0 : i32
    %c0_i32_0 = arith.constant 0 : i32
    return %arg0, %c0_i32 : i32, i32
  }
}

</mosaic_0001>

<llo_original>
// kernel: tpu_custom_call.1
$region0: #{tpu_custom_call.1}
  #allocation0 [shape = 'u32[]', space=smem, size = 0x4, offset = 0x4, fixed_abs, tag = 'smem constant byte address 0x4 - core index']
  #allocation1 [shape = 'u32[144,128]{1,0:T(1,128)}', space=vmem, size = 0x12000, scoped, tag = 'internal scratch']
  %s0 = inlined_call_operand.hbm [shape: f32[8,64], index: 0, kind: input, shape index: {}]
  %s1 = inlined_call_operand.hbm [shape: f32[8,32], index: 1, kind: input, shape index: {}]
  %s2 = inlined_call_operand.hbm [shape: f32[8,64], index: 2, kind: output, shape index: {}]
  %s3 = sld [smem:[#allocation0]]
  $region26: #{tpu_custom_call.1} parent=0
    _
  %s5 = ssub.s32 1, %s3
  %s6 = scalar_select 0, %s5, %s3
  $region1: #{tpu_custom_call.1} parent=0
    #allocation2 [shape = 'u8[4096]{0}', space=vmem, size = 0x1000, scoped, tag = 'input window, operand 0, single buffered']
    #allocation3 [shape = 's32[1]{0}', space=sflag, size = 0x4, scoped, tag = 'scoped memory for tpu_custom_call.1']
    #allocation4 [shape = 's32[1]{0}', space=sflag, size = 0x4, scoped, tag = 'scoped memory for tpu_custom_call.1']
    #allocation5 [shape = 'u8[4096]{0}', space=vmem, size = 0x1000, scoped, tag = 'input window, operand 1, single buffered']
    #allocation6 [shape = 's32[1]{0}', space=sflag, size = 0x4, scoped, tag = 'scoped memory for tpu_custom_call.1']
    #allocation7 [shape = 'u8[4096]{0}', space=vmem, size = 0x1000, scoped, tag = 'output window, operand 0, single buffered']
    %7 = vsyncpa [#allocation3], 0
    %8 = vsyncpa [#allocation6], 0
    %9 = vsyncpa [#allocation4], 0
    // Predicated region
    $region2: #{tpu_custom_call.1} parent=1 // pred_check
      _
    $region3: #{tpu_custom_call.1} parent=1 // pred_check_branch
      %11 = sbr.rel (0) target = $region5
    $region4: #{tpu_custom_call.1} parent=1 // pred_region
      %s13 = ssub.s32 128, 128
      %14 = vsyncadd [#allocation3], %s13
      %s16 = sshll.u32 [#allocation2], 4
      %s17 = int_to_ptr.vmem [resolvable:$true] %s16
      %19 = dma.hbm_to_vmem [thread:$0]  %s0, 128, %s17, [#allocation3]
    $region5: #{tpu_custom_call.1} parent=1 // pred_fallthru
      _
    // Predicated region
    $region6: #{tpu_custom_call.1} parent=1 // pred_check
      _
    $region7: #{tpu_custom_call.1} parent=1 // pred_check_branch
      %21 = sbr.rel (0) target = $region9
    $region8: #{tpu_custom_call.1} parent=1 // pred_region
      %s23 = ssub.s32 128, 128
      %24 = vsyncadd [#allocation6], %s23
      %s26 = sshll.u32 [#allocation5], 4
      %s27 = int_to_ptr.vmem [resolvable:$true] %s26
      %29 = dma.hbm_to_vmem [thread:$0]  %s1, 128, %s27, [#allocation6]
    $region9: #{tpu_custom_call.1} parent=1 // pred_fallthru
      _
    // Predicated region
    $region10: #{tpu_custom_call.1} parent=1 // pred_check
      _
    $region11: #{tpu_custom_call.1} parent=1 // pred_check_branch
      %31 = sbr.rel (0) target = $region13
    $region12: #{tpu_custom_call.1} parent=1 // pred_region
      %32 = dma.done [#allocation3], 128
    $region13: #{tpu_custom_call.1} parent=1 // pred_fallthru
      _
    // Predicated region
    $region14: #{tpu_custom_call.1} parent=1 // pred_check
      _
    $region15: #{tpu_custom_call.1} parent=1 // pred_check_branch
      %34 = sbr.rel (0) target = $region17
    $region16: #{tpu_custom_call.1} parent=1 // pred_region
      %35 = dma.done [#allocation6], 128
    $region17: #{tpu_custom_call.1} parent=1 // pred_fallthru
      _
    %v36 = vld [vmem:[#allocation5] sm:$0xff]
    %38 = vrot.lane.b32.xlu0 %v36, 32
    %v39 = vpop.permute.xlu0 %38
    %vm41 = vcmask 261120
    %v42 = vsel %vm41, %v36, %v39
    %v43 = vld [vmem:[#allocation2] sm:$0xff]
    %v44 = vadd.f32 %v43, %v42
    %vm45 = vcmask 523264
    %46 = vst.msk [vmem:[#allocation7] sm:$0xff] %vm45, %v44
    // Predicated region
    $region18: #{tpu_custom_call.1} parent=1 // pred_check
      _
    $region19: #{tpu_custom_call.1} parent=1 // pred_check_branch
      %48 = sbr.rel (0) target = $region21
    $region20: #{tpu_custom_call.1} parent=1 // pred_region
      %s50 = ssub.s32 128, 128
      %51 = vsyncadd [#allocation4], %s50
      %s53 = sshll.u32 [#allocation7], 4
      %s54 = int_to_ptr.vmem [resolvable:$true] %s53
      %56 = dma.vmem_to_hbm [thread:$0]  %s54, 128, %s2, [#allocation4]
    $region21: #{tpu_custom_call.1} parent=1 // pred_fallthru
      _
    // Predicated region
    $region22: #{tpu_custom_call.1} parent=1 // pred_check
      _
    $region23: #{tpu_custom_call.1} parent=1 // pred_check_branch
      %58 = sbr.rel (0) target = $region25
    $region24: #{tpu_custom_call.1} parent=1 // pred_region
      %59 = dma.done [#allocation4], 128
    $region25: #{tpu_custom_call.1} parent=1 // pred_fallthru
      _
    %60 = vsyncpa [#allocation3], 1
    %61 = vsyncpa [#allocation6], 1
    %62 = vsyncpa [#allocation4], 1

</llo_original>
